<compile_context>
chip_gen: v7x
topology: tpu7x:2x2x1
jax: 0.10.0
libtpu: 0.0.40
codegen_flags: <defaults>
</compile_context>

<pallas_src>
import functools

import jax
import jax.numpy as jnp
from jax.experimental import pallas as pl
from jax.experimental.pallas import tpu as pltpu

LANE = 128      # vreg lane width (all TPU gens)
SUBLANE = 8     # vreg sublane count (f32)


def _round_up(n, m):
    return ((n + m - 1) // m) * m


def _pad2d(a, rows, cols):
    r, c = a.shape
    return jnp.pad(a, ((0, rows - r), (0, cols - c)))


def mlp_time_kernel(x_ref,
                    w1_ref, b1_ref,
                    w2_ref, b2_ref,
                    w3_ref, b3_ref,
                    w4_ref, b4_ref,
                    out_ref):
    # One (TILE_B, 128) batch tile per grid step; whole padded network is
    # resident in VMEM. All matmuls hit the MXU with f32 accumulation.
    x = x_ref[...]

    h = jnp.dot(x, w1_ref[...], preferred_element_type=jnp.float32) + b1_ref[...]
    h = jnp.maximum(h, 0.0)

    h = jnp.dot(h, w2_ref[...], preferred_element_type=jnp.float32) + b2_ref[...]
    h = jnp.maximum(h, 0.0)

    h = jnp.dot(h, w3_ref[...], preferred_element_type=jnp.float32) + b3_ref[...]
    h = jnp.maximum(h, 0.0)

    out = jnp.dot(h, w4_ref[...], preferred_element_type=jnp.float32) + b4_ref[...]
    out_ref[...] = out.astype(out_ref.dtype)   # lane-dense (padded) store


@functools.partial(jax.jit, static_argnames=("tile_b",))
def mlp_time_forward(x, params, tile_b=512):
    """x: (B, input_dim) f32. params: dict of (in,out) weights, (1,out) biases."""
    B, in_dim = x.shape
    hid_dim = params["w1"].shape[1]
    out_dim = params["w4"].shape[1]

    # Lane-pad every feature dim to a multiple of 128 (zero padding keeps the
    # math exact: padded lanes stay zero through every layer).
    in_p = _round_up(in_dim, LANE)
    hid_p = _round_up(hid_dim, LANE)
    out_p = _round_up(out_dim, LANE)

    # Batch tile: 512 rows targets ~85% of HBM roofline for the streamed
    # x/out slabs while keeping the fused activation chain comfortably inside
    # VMEM/vregs on every generation (incl. v7x's 64 MiB VMEM).
    eff_tile_b = min(tile_b, _round_up(B, SUBLANE))
    b_pad = _round_up(B, eff_tile_b)
    grid_b = b_pad // eff_tile_b

    x_p = _pad2d(x, b_pad, in_p)
    w1 = _pad2d(params["w1"], in_p, hid_p)
    w2 = _pad2d(params["w2"], hid_p, hid_p)
    w3 = _pad2d(params["w3"], hid_p, hid_p)
    w4 = _pad2d(params["w4"], hid_p, out_p)
    b1 = _pad2d(params["b1"], 1, hid_p)
    b2 = _pad2d(params["b2"], 1, hid_p)
    b3 = _pad2d(params["b3"], 1, hid_p)
    b4 = _pad2d(params["b4"], 1, out_p)

    # Batch-tiled x/out; weights & biases pinned at block (0, 0) so they are
    # fetched once and reused across every grid step.
    x_spec = pl.BlockSpec((eff_tile_b, in_p), lambda i: (i, 0))
    out_spec = pl.BlockSpec((eff_tile_b, out_p), lambda i: (i, 0))

    def const_spec(shape):
        return pl.BlockSpec(shape, lambda i: (0, 0))

    weight_args = (w1, b1, w2, b2, w3, b3, w4, b4)

    out_padded = pl.pallas_call(
        mlp_time_kernel,
        out_shape=jax.ShapeDtypeStruct((b_pad, out_p), jnp.float32),
        grid=(grid_b,),
        in_specs=[x_spec] + [const_spec(a.shape) for a in weight_args],
        out_specs=out_spec,
        compiler_params=pltpu.CompilerParams(
            # Batch tiles are independent -> shard across v7x's two TCs.
            dimension_semantics=("parallel",),
            vmem_limit_bytes=64 * 1024 * 1024,
        ),
    )(x_p, *weight_args)

    return out_padded[:B, :out_dim]


def init_params(key, input_dim, hidden_dim, output_dim):
    """Deterministic synthetic init matching nn.Linear parameter shapes,
    stored transposed as (in, out)."""
    ks = jax.random.split(key, 8)

    def linear(kw, kb, fan_in, fan_out):
        bound = 1.0 / jnp.sqrt(fan_in)
        w = jax.random.uniform(kw, (fan_in, fan_out), jnp.float32, -bound, bound)
        b = jax.random.uniform(kb, (1, fan_out), jnp.float32, -bound, bound)
        return w, b

    w1, b1 = linear(ks[0], ks[1], input_dim, hidden_dim)
    w2, b2 = linear(ks[2], ks[3], hidden_dim, hidden_dim)
    w3, b3 = linear(ks[4], ks[5], hidden_dim, hidden_dim)
    w4, b4 = linear(ks[6], ks[7], hidden_dim, output_dim)
    return dict(w1=w1, b1=b1, w2=w2, b2=b2, w3=w3, b3=b3, w4=w4, b4=b4)


def mlp_time_ref(x, p):
    h = jnp.maximum(x @ p["w1"] + p["b1"], 0.0)
    h = jnp.maximum(h @ p["w2"] + p["b2"], 0.0)
    h = jnp.maximum(h @ p["w3"] + p["b3"], 0.0)
    return h @ p["w4"] + p["b4"]


if __name__ == "__main__":
    key = jax.random.PRNGKey(0)
    k_x, k_p = jax.random.split(key)

    batch, input_dim, hidden_dim, output_dim = 8, 16, 32, 4
    x = jax.random.normal(k_x, (batch, input_dim), jnp.float32)
    params = init_params(k_p, input_dim, hidden_dim, output_dim)

    out = mlp_time_forward(x, params)
    out = jax.block_until_ready(out)

    ref = mlp_time_ref(x, params)
    assert out.shape == (batch, output_dim)
    assert jnp.allclose(out, ref, atol=1e-5, rtol=1e-5)

    print("KERNEL_OK")
</pallas_src>

<mosaic_0001>
module attributes {stable_mosaic.version = 11 : i64} {
  func.func @mlp_time_kernel(%arg0: i32, %arg1: memref<8x128xf32, #tpu.memory_space<vmem>>, %arg2: memref<128x128xf32, #tpu.memory_space<vmem>>, %arg3: memref<1x128xf32, #tpu.memory_space<vmem>>, %arg4: memref<128x128xf32, #tpu.memory_space<vmem>>, %arg5: memref<1x128xf32, #tpu.memory_space<vmem>>, %arg6: memref<128x128xf32, #tpu.memory_space<vmem>>, %arg7: memref<1x128xf32, #tpu.memory_space<vmem>>, %arg8: memref<128x128xf32, #tpu.memory_space<vmem>>, %arg9: memref<1x128xf32, #tpu.memory_space<vmem>>, %arg10: memref<8x128xf32, #tpu.memory_space<vmem>>) attributes {dimension_semantics = [#tpu.dimension_semantics<parallel>], iteration_bounds = array<i64: 1>, scalar_prefetch = 0 : i64, scratch_operands = 0 : i64, tpu.core_type = #tpu.core_type<tc>, window_params = [{transform_indices = @transform_0, window_bounds = array<i64: 8, 128>}, {pipeline_mode = #tpu.pipeline_mode<synchronous>, transform_indices = @transform_1, window_bounds = array<i64: 128, 128>}, {pipeline_mode = #tpu.pipeline_mode<synchronous>, transform_indices = @transform_2, window_bounds = array<i64: 1, 128>}, {pipeline_mode = #tpu.pipeline_mode<synchronous>, transform_indices = @transform_3, window_bounds = array<i64: 128, 128>}, {pipeline_mode = #tpu.pipeline_mode<synchronous>, transform_indices = @transform_4, window_bounds = array<i64: 1, 128>}, {pipeline_mode = #tpu.pipeline_mode<synchronous>, transform_indices = @transform_5, window_bounds = array<i64: 128, 128>}, {pipeline_mode = #tpu.pipeline_mode<synchronous>, transform_indices = @transform_6, window_bounds = array<i64: 1, 128>}, {pipeline_mode = #tpu.pipeline_mode<synchronous>, transform_indices = @transform_7, window_bounds = array<i64: 128, 128>}, {pipeline_mode = #tpu.pipeline_mode<synchronous>, transform_indices = @transform_8, window_bounds = array<i64: 1, 128>}, {transform_indices = @transform_9, window_bounds = array<i64: 8, 128>}]} {
    %c0 = arith.constant 0 : index
    %c0_0 = arith.constant 0 : index
    %0 = vector.load %arg1[%c0, %c0_0] : memref<8x128xf32, #tpu.memory_space<vmem>>, vector<8x128xf32>
    %c0_1 = arith.constant 0 : index
    %c0_2 = arith.constant 0 : index
    %1 = vector.load %arg2[%c0_1, %c0_2] : memref<128x128xf32, #tpu.memory_space<vmem>>, vector<128x128xf32>
    %cst = arith.constant dense<0.000000e+00> : vector<8x128xf32>
    %2 = tpu.matmul %0, %1, %cst {dimension_numbers = #tpu.dot_dimension_numbers<[1], [0], [0], [1], [0, 0, 1, 1], [], []>} : vector<8x128xf32>, vector<128x128xf32>, vector<8x128xf32> -> vector<8x128xf32>
    %c0_3 = arith.constant 0 : index
    %c0_4 = arith.constant 0 : index
    %3 = vector.load %arg3[%c0_3, %c0_4] : memref<1x128xf32, #tpu.memory_space<vmem>>, vector<1x128xf32>
    %4 = vector.broadcast %3 : vector<1x128xf32> to vector<8x128xf32>
    %5 = arith.addf %2, %4 : vector<8x128xf32>
    %cst_5 = arith.constant 0.000000e+00 : f32
    %6 = vector.broadcast %cst_5 : f32 to vector<8x128xf32>
    %7 = arith.maximumf %5, %6 : vector<8x128xf32>
    %c0_6 = arith.constant 0 : index
    %c0_7 = arith.constant 0 : index
    %8 = vector.load %arg4[%c0_6, %c0_7] : memref<128x128xf32, #tpu.memory_space<vmem>>, vector<128x128xf32>
    %cst_8 = arith.constant dense<0.000000e+00> : vector<8x128xf32>
    %9 = tpu.matmul %7, %8, %cst_8 {dimension_numbers = #tpu.dot_dimension_numbers<[1], [0], [0], [1], [0, 0, 1, 1], [], []>} : vector<8x128xf32>, vector<128x128xf32>, vector<8x128xf32> -> vector<8x128xf32>
    %c0_9 = arith.constant 0 : index
    %c0_10 = arith.constant 0 : index
    %10 = vector.load %arg5[%c0_9, %c0_10] : memref<1x128xf32, #tpu.memory_space<vmem>>, vector<1x128xf32>
    %11 = vector.broadcast %10 : vector<1x128xf32> to vector<8x128xf32>
    %12 = arith.addf %9, %11 : vector<8x128xf32>
    %cst_11 = arith.constant 0.000000e+00 : f32
    %13 = vector.broadcast %cst_11 : f32 to vector<8x128xf32>
    %14 = arith.maximumf %12, %13 : vector<8x128xf32>
    %c0_12 = arith.constant 0 : index
    %c0_13 = arith.constant 0 : index
    %15 = vector.load %arg6[%c0_12, %c0_13] : memref<128x128xf32, #tpu.memory_space<vmem>>, vector<128x128xf32>
    %cst_14 = arith.constant dense<0.000000e+00> : vector<8x128xf32>
    %16 = tpu.matmul %14, %15, %cst_14 {dimension_numbers = #tpu.dot_dimension_numbers<[1], [0], [0], [1], [0, 0, 1, 1], [], []>} : vector<8x128xf32>, vector<128x128xf32>, vector<8x128xf32> -> vector<8x128xf32>
    %c0_15 = arith.constant 0 : index
    %c0_16 = arith.constant 0 : index
    %17 = vector.load %arg7[%c0_15, %c0_16] : memref<1x128xf32, #tpu.memory_space<vmem>>, vector<1x128xf32>
    %18 = vector.broadcast %17 : vector<1x128xf32> to vector<8x128xf32>
    %19 = arith.addf %16, %18 : vector<8x128xf32>
    %cst_17 = arith.constant 0.000000e+00 : f32
    %20 = vector.broadcast %cst_17 : f32 to vector<8x128xf32>
    %21 = arith.maximumf %19, %20 : vector<8x128xf32>
    %c0_18 = arith.constant 0 : index
    %c0_19 = arith.constant 0 : index
    %22 = vector.load %arg8[%c0_18, %c0_19] : memref<128x128xf32, #tpu.memory_space<vmem>>, vector<128x128xf32>
    %cst_20 = arith.constant dense<0.000000e+00> : vector<8x128xf32>
    %23 = tpu.matmul %21, %22, %cst_20 {dimension_numbers = #tpu.dot_dimension_numbers<[1], [0], [0], [1], [0, 0, 1, 1], [], []>} : vector<8x128xf32>, vector<128x128xf32>, vector<8x128xf32> -> vector<8x128xf32>
    %c0_21 = arith.constant 0 : index
    %c0_22 = arith.constant 0 : index
    %24 = vector.load %arg9[%c0_21, %c0_22] : memref<1x128xf32, #tpu.memory_space<vmem>>, vector<1x128xf32>
    %25 = vector.broadcast %24 : vector<1x128xf32> to vector<8x128xf32>
    %26 = arith.addf %23, %25 : vector<8x128xf32>
    %c0_23 = arith.constant 0 : index
    %c0_24 = arith.constant 0 : index
    %27 = vector.load %arg10[%c0_23, %c0_24] : memref<8x128xf32, #tpu.memory_space<vmem>>, vector<8x128xf32>
    tpu.vector_store %arg10[%c0_23, %c0_24], %26 {strides = array<i32>} : memref<8x128xf32, #tpu.memory_space<vmem>>, vector<8x128xf32>,
    return
  }
  func.func @transform_0(%arg0: i32) -> (i32, i32) {
    %c0_i32 = arith.constant 0 : i32
    %c0_i32_0 = arith.constant 0 : i32
    return %arg0, %c0_i32 : i32, i32
  }
  func.func @transform_1(%arg0: i32) -> (i32, i32) {
    %c0_i32 = arith.constant 0 : i32
    %c0_i32_0 = arith.constant 0 : i32
    %c0_i32_1 = arith.constant 0 : i32
    return %c0_i32, %c0_i32_0 : i32, i32
  }
  func.func @transform_2(%arg0: i32) -> (i32, i32) {
    %c0_i32 = arith.constant 0 : i32
    %c0_i32_0 = arith.constant 0 : i32
    %c0_i32_1 = arith.constant 0 : i32
    return %c0_i32, %c0_i32_0 : i32, i32
  }
  func.func @transform_3(%arg0: i32) -> (i32, i32) {
    %c0_i32 = arith.constant 0 : i32
    %c0_i32_0 = arith.constant 0 : i32
    %c0_i32_1 = arith.constant 0 : i32
    return %c0_i32, %c0_i32_0 : i32, i32
  }
  func.func @transform_4(%arg0: i32) -> (i32, i32) {
    %c0_i32 = arith.constant 0 : i32
    %c0_i32_0 = arith.constant 0 : i32
    %c0_i32_1 = arith.constant 0 : i32
    return %c0_i32, %c0_i32_0 : i32, i32
  }
  func.func @transform_5(%arg0: i32) -> (i32, i32) {
    %c0_i32 = arith.constant 0 : i32
    %c0_i32_0 = arith.constant 0 : i32
    %c0_i32_1 = arith.constant 0 : i32
    return %c0_i32, %c0_i32_0 : i32, i32
  }
  func.func @transform_6(%arg0: i32) -> (i32, i32) {
    %c0_i32 = arith.constant 0 : i32
    %c0_i32_0 = arith.constant 0 : i32
    %c0_i32_1 = arith.constant 0 : i32
    return %c0_i32, %c0_i32_0 : i32, i32
  }
  func.func @transform_7(%arg0: i32) -> (i32, i32) {
    %c0_i32 = arith.constant 0 : i32
    %c0_i32_0 = arith.constant 0 : i32
    %c0_i32_1 = arith.constant 0 : i32
    return %c0_i32, %c0_i32_0 : i32, i32
  }
  func.func @transform_8(%arg0: i32) -> (i32, i32) {
    %c0_i32 = arith.constant 0 : i32
    %c0_i32_0 = arith.constant 0 : i32
    %c0_i32_1 = arith.constant 0 : i32
    return %c0_i32, %c0_i32_0 : i32, i32
  }
  func.func @transform_9(%arg0: i32) -> (i32, i32) {
    %c0_i32 = arith.constant 0 : i32
    %c0_i32_0 = arith.constant 0 : i32
    return %arg0, %c0_i32 : i32, i32
  }
}

</mosaic_0001>

<llo_original>
// kernel: mlp_time_forward.1
$region0: #{mlp_time_forward.1}
  #allocation0 [shape = 'u32[]', space=smem, size = 0x4, offset = 0x4, fixed_abs, tag = 'smem constant byte address 0x4 - core index']
  #allocation1 [shape = 'u32[144,128]{1,0:T(1,128)}', space=vmem, size = 0x12000, scoped, tag = 'internal scratch']
  %s0 = inlined_call_operand.hbm [shape: f32[8,128], index: 0, kind: input, shape index: {}]
  %s1 = inlined_call_operand.hbm [shape: f32[128,128], index: 1, kind: input, shape index: {}]
  %s2 = inlined_call_operand.hbm [shape: f32[1,128], index: 2, kind: input, shape index: {}]
  %s3 = inlined_call_operand.hbm [shape: f32[128,128], index: 3, kind: input, shape index: {}]
  %s4 = inlined_call_operand.hbm [shape: f32[1,128], index: 4, kind: input, shape index: {}]
  %s5 = inlined_call_operand.hbm [shape: f32[128,128], index: 5, kind: input, shape index: {}]
  %s6 = inlined_call_operand.hbm [shape: f32[1,128], index: 6, kind: input, shape index: {}]
  %s7 = inlined_call_operand.hbm [shape: f32[128,128], index: 7, kind: input, shape index: {}]
  %s8 = inlined_call_operand.hbm [shape: f32[1,128], index: 8, kind: input, shape index: {}]
  %s9 = inlined_call_operand.hbm [shape: f32[8,128], index: 9, kind: output, shape index: {}]
  %s10 = sld [smem:[#allocation0]]
  $region82: #{mlp_time_forward.1} parent=0
    _
  %s12 = ssub.s32 1, %s10
  %s13 = scalar_select 0, %s12, %s10
  $region1: #{mlp_time_forward.1} parent=0
    #allocation2 [shape = 'u8[4096]{0}', space=vmem, size = 0x1000, scoped, tag = 'input window, operand 0, single buffered']
    #allocation3 [shape = 's32[1]{0}', space=sflag, size = 0x4, scoped, tag = 'scoped memory for mlp_time_forward.1']
    #allocation4 [shape = 's32[1]{0}', space=sflag, size = 0x4, scoped, tag = 'scoped memory for mlp_time_forward.1']
    #allocation5 [shape = 'u8[65536]{0}', space=vmem, size = 0x10000, scoped, tag = 'input window, operand 1, single buffered']
    #allocation6 [shape = 's32[1]{0}', space=sflag, size = 0x4, scoped, tag = 'scoped memory for mlp_time_forward.1']
    #allocation7 [shape = 'u8[512]{0}', space=vmem, size = 0x400, scoped, tag = 'input window, operand 2, single buffered']
    #allocation8 [shape = 'u8[65536]{0}', space=vmem, size = 0x10000, scoped, tag = 'input window, operand 3, single buffered']
    #allocation9 [shape = 's32[1]{0}', space=sflag, size = 0x4, scoped, tag = 'scoped memory for mlp_time_forward.1']
    #allocation10 [shape = 'u8[512]{0}', space=vmem, size = 0x400, scoped, tag = 'input window, operand 4, single buffered']
    #allocation11 [shape = 'u8[65536]{0}', space=vmem, size = 0x10000, scoped, tag = 'input window, operand 5, single buffered']
    #allocation12 [shape = 's32[1]{0}', space=sflag, size = 0x4, scoped, tag = 'scoped memory for mlp_time_forward.1']
    #allocation13 [shape = 'u8[512]{0}', space=vmem, size = 0x400, scoped, tag = 'input window, operand 6, single buffered']
    #allocation14 [shape = 'u8[65536]{0}', space=vmem, size = 0x10000, scoped, tag = 'input window, operand 7, single buffered']
    #allocation15 [shape = 's32[1]{0}', space=sflag, size = 0x4, scoped, tag = 'scoped memory for mlp_time_forward.1']
    #allocation16 [shape = 'u8[512]{0}', space=vmem, size = 0x400, scoped, tag = 'input window, operand 8, single buffered']
    #allocation17 [shape = 'u8[4096]{0}', space=vmem, size = 0x1000, scoped, tag = 'output window, operand 0, single buffered']
    %14 = vsyncpa [#allocation3], 0
    %15 = vsyncpa [#allocation6], 0
    %16 = vsyncpa [#allocation9], 0
    %17 = vsyncpa [#allocation12], 0
    %18 = vsyncpa [#allocation15], 0
    %19 = vsyncpa [#allocation4], 0
    // Predicated region
    $region2: #{mlp_time_forward.1} parent=1 // pred_check
      _
    $region3: #{mlp_time_forward.1} parent=1 // pred_check_branch
      %21 = sbr.rel (0) target = $region5
    $region4: #{mlp_time_forward.1} parent=1 // pred_region
      %s23 = ssub.s32 128, 128
      %24 = vsyncadd [#allocation3], %s23
      %s26 = sshll.u32 [#allocation2], 4
      %s27 = int_to_ptr.vmem [resolvable:$true] %s26
      %29 = dma.hbm_to_vmem [thread:$0]  %s0, 128, %s27, [#allocation3]
    $region5: #{mlp_time_forward.1} parent=1 // pred_fallthru
      _
    // Predicated region
    $region6: #{mlp_time_forward.1} parent=1 // pred_check
      _
    $region7: #{mlp_time_forward.1} parent=1 // pred_check_branch
      %31 = sbr.rel (0) target = $region9
    $region8: #{mlp_time_forward.1} parent=1 // pred_region
      %s33 = ssub.s32 2048, 2048
      %34 = vsyncadd [#allocation6], %s33
      %s35 = sshll.u32 [#allocation5], 4
      %s36 = int_to_ptr.vmem [resolvable:$true] %s35
      %41 = dma.hbm_to_vmem [thread:$0]  %s1, 2048, %s36, [#allocation6], 128, 128, 8
    $region9: #{mlp_time_forward.1} parent=1 // pred_fallthru
      _
    // Predicated region
    $region10: #{mlp_time_forward.1} parent=1 // pred_check
      _
    $region11: #{mlp_time_forward.1} parent=1 // pred_check_branch
      %43 = sbr.rel (0) target = $region13
    $region12: #{mlp_time_forward.1} parent=1 // pred_region
      %s45 = ssub.s32 16, 16
      %46 = vsyncadd [#allocation6], %s45
      %s48 = sshll.u32 [#allocation7], 4
      %s49 = int_to_ptr.vmem [resolvable:$true] %s48
      %51 = dma.hbm_to_vmem [thread:$0]  %s2, 16, %s49, [#allocation6]
    $region13: #{mlp_time_forward.1} parent=1 // pred_fallthru
      _
    // Predicated region
    $region14: #{mlp_time_forward.1} parent=1 // pred_check
      _
    $region15: #{mlp_time_forward.1} parent=1 // pred_check_branch
      %53 = sbr.rel (0) target = $region17
    $region16: #{mlp_time_forward.1} parent=1 // pred_region
      %s55 = ssub.s32 2048, 2048
      %56 = vsyncadd [#allocation9], %s55
      %s57 = sshll.u32 [#allocation8], 4
      %s58 = int_to_ptr.vmem [resolvable:$true] %s57
      %63 = dma.hbm_to_vmem [thread:$0]  %s3, 2048, %s58, [#allocation9], 128, 128, 8
    $region17: #{mlp_time_forward.1} parent=1 // pred_fallthru
      _
    // Predicated region
    $region18: #{mlp_time_forward.1} parent=1 // pred_check
      _
    $region19: #{mlp_time_forward.1} parent=1 // pred_check_branch
      %65 = sbr.rel (0) target = $region21
    $region20: #{mlp_time_forward.1} parent=1 // pred_region
      %s67 = ssub.s32 16, 16
      %68 = vsyncadd [#allocation9], %s67
      %s70 = sshll.u32 [#allocation10], 4
      %s71 = int_to_ptr.vmem [resolvable:$true] %s70
      %73 = dma.hbm_to_vmem [thread:$0]  %s4, 16, %s71, [#allocation9]
    $region21: #{mlp_time_forward.1} parent=1 // pred_fallthru
      _
    // Predicated region
    $region22: #{mlp_time_forward.1} parent=1 // pred_check
      _
    $region23: #{mlp_time_forward.1} parent=1 // pred_check_branch
      %75 = sbr.rel (0) target = $region25
    $region24: #{mlp_time_forward.1} parent=1 // pred_region
      %s77 = ssub.s32 2048, 2048
      %78 = vsyncadd [#allocation12], %s77
      %s79 = sshll.u32 [#allocation11], 4
      %s80 = int_to_ptr.vmem [resolvable:$true] %s79
      %85 = dma.hbm_to_vmem [thread:$0]  %s5, 2048, %s80, [#allocation12], 128, 128, 8
    $region25: #{mlp_time_forward.1} parent=1 // pred_fallthru
      _
    // Predicated region
    $region26: #{mlp_time_forward.1} parent=1 // pred_check
      _
    $region27: #{mlp_time_forward.1} parent=1 // pred_check_branch
      %87 = sbr.rel (0) target = $region29
    $region28: #{mlp_time_forward.1} parent=1 // pred_region
      %s89 = ssub.s32 16, 16
      %90 = vsyncadd [#allocation12], %s89
      %s92 = sshll.u32 [#allocation13], 4
      %s93 = int_to_ptr.vmem [resolvable:$true] %s92
      %95 = dma.hbm_to_vmem [thread:$0]  %s6, 16, %s93, [#allocation12]
    $region29: #{mlp_time_forward.1} parent=1 // pred_fallthru
      _
    // Predicated region
    $region30: #{mlp_time_forward.1} parent=1 // pred_check
      _
    $region31: #{mlp_time_forward.1} parent=1 // pred_check_branch
      %97 = sbr.rel (0) target = $region33
    $region32: #{mlp_time_forward.1} parent=1 // pred_region
      %s99 = ssub.s32 2048, 2048
      %100 = vsyncadd [#allocation15], %s99
      %s101 = sshll.u32 [#allocation14], 4
      %s102 = int_to_ptr.vmem [resolvable:$true] %s101
      %107 = dma.hbm_to_vmem [thread:$0]  %s7, 2048, %s102, [#allocation15], 128, 128, 8
    $region33: #{mlp_time_forward.1} parent=1 // pred_fallthru
      _
    // Predicated region
    $region34: #{mlp_time_forward.1} parent=1 // pred_check
      _
    $region35: #{mlp_time_forward.1} parent=1 // pred_check_branch
      %109 = sbr.rel (0) target = $region37
    $region36: #{mlp_time_forward.1} parent=1 // pred_region
      %s111 = ssub.s32 16, 16
      %112 = vsyncadd [#allocation15], %s111
      %s114 = sshll.u32 [#allocation16], 4
      %s115 = int_to_ptr.vmem [resolvable:$true] %s114
      %117 = dma.hbm_to_vmem [thread:$0]  %s8, 16, %s115, [#allocation15]
    $region37: #{mlp_time_forward.1} parent=1 // pred_fallthru
      _
    // Predicated region
    $region38: #{mlp_time_forward.1} parent=1 // pred_check
      _
    $region39: #{mlp_time_forward.1} parent=1 // pred_check_branch
      %119 = sbr.rel (0) target = $region41
    $region40: #{mlp_time_forward.1} parent=1 // pred_region
      %120 = dma.done [#allocation3], 128
    $region41: #{mlp_time_forward.1} parent=1 // pred_fallthru
      _
    // Predicated region
    $region42: #{mlp_time_forward.1} parent=1 // pred_check
      _
    $region43: #{mlp_time_forward.1} parent=1 // pred_check_branch
      %122 = sbr.rel (0) target = $region45
    $region44: #{mlp_time_forward.1} parent=1 // pred_region
      %123 = dma.done [#allocation6], 2048
    $region45: #{mlp_time_forward.1} parent=1 // pred_fallthru
      _
    // Predicated region
    $region46: #{mlp_time_forward.1} parent=1 // pred_check
      _
    $region47: #{mlp_time_forward.1} parent=1 // pred_check_branch
      %125 = sbr.rel (0) target = $region49
    $region48: #{mlp_time_forward.1} parent=1 // pred_region
      %126 = dma.done [#allocation6], 16
    $region49: #{mlp_time_forward.1} parent=1 // pred_fallthru
      _
    // Predicated region
    $region50: #{mlp_time_forward.1} parent=1 // pred_check
      _
    $region51: #{mlp_time_forward.1} parent=1 // pred_check_branch
      %128 = sbr.rel (0) target = $region53
    $region52: #{mlp_time_forward.1} parent=1 // pred_region
      %129 = dma.done [#allocation9], 2048
    $region53: #{mlp_time_forward.1} parent=1 // pred_fallthru
      _
    // Predicated region
    $region54: #{mlp_time_forward.1} parent=1 // pred_check
      _
    $region55: #{mlp_time_forward.1} parent=1 // pred_check_branch
      %131 = sbr.rel (0) target = $region57
    $region56: #{mlp_time_forward.1} parent=1 // pred_region
      %132 = dma.done [#allocation9], 16
    $region57: #{mlp_time_forward.1} parent=1 // pred_fallthru
      _
    // Predicated region
    $region58: #{mlp_time_forward.1} parent=1 // pred_check
      _
    $region59: #{mlp_time_forward.1} parent=1 // pred_check_branch
      %134 = sbr.rel (0) target = $region61
    $region60: #{mlp_time_forward.1} parent=1 // pred_region
      %135 = dma.done [#allocation12], 2048
    $region61: #{mlp_time_forward.1} parent=1 // pred_fallthru
      _
    // Predicated region
    $region62: #{mlp_time_forward.1} parent=1 // pred_check
      _
    $region63: #{mlp_time_forward.1} parent=1 // pred_check_branch
      %137 = sbr.rel (0) target = $region65
    $region64: #{mlp_time_forward.1} parent=1 // pred_region
      %138 = dma.done [#allocation12], 16
    $region65: #{mlp_time_forward.1} parent=1 // pred_fallthru
      _
    // Predicated region
    $region66: #{mlp_time_forward.1} parent=1 // pred_check
      _
    $region67: #{mlp_time_forward.1} parent=1 // pred_check_branch
      %140 = sbr.rel (0) target = $region69
    $region68: #{mlp_time_forward.1} parent=1 // pred_region
      %141 = dma.done [#allocation15], 2048
    $region69: #{mlp_time_forward.1} parent=1 // pred_fallthru
      _
    // Predicated region
    $region70: #{mlp_time_forward.1} parent=1 // pred_check
      _
    $region71: #{mlp_time_forward.1} parent=1 // pred_check_branch
      %143 = sbr.rel (0) target = $region73
    $region72: #{mlp_time_forward.1} parent=1 // pred_region
      %144 = dma.done [#allocation15], 16
    $region73: #{mlp_time_forward.1} parent=1 // pred_fallthru
      _
    %v145 = vld [vmem:[#allocation2] sm:$0xff]
    %v146 = vld [vmem:[#allocation5] sm:$0xff]
    %v147 = vld [vmem:[#allocation5 + $0x8] sm:$0xff]
    %v148 = vld [vmem:[#allocation5 + $0x10] sm:$0xff]
    %v149 = vld [vmem:[#allocation5 + $0x18] sm:$0xff]
    %v150 = vld [vmem:[#allocation5 + $0x20] sm:$0xff]
    %v151 = vld [vmem:[#allocation5 + $0x28] sm:$0xff]
    %v152 = vld [vmem:[#allocation5 + $0x30] sm:$0xff]
    %v153 = vld [vmem:[#allocation5 + $0x38] sm:$0xff]
    %v154 = vld [vmem:[#allocation5 + $0x40] sm:$0xff]
    %v155 = vld [vmem:[#allocation5 + $0x48] sm:$0xff]
    %v156 = vld [vmem:[#allocation5 + $0x50] sm:$0xff]
    %v157 = vld [vmem:[#allocation5 + $0x58] sm:$0xff]
    %v158 = vld [vmem:[#allocation5 + $0x60] sm:$0xff]
    %v159 = vld [vmem:[#allocation5 + $0x68] sm:$0xff]
    %v160 = vld [vmem:[#allocation5 + $0x70] sm:$0xff]
    %v161 = vld [vmem:[#allocation5 + $0x78] sm:$0xff]
    %v162 = vld [vmem:[#allocation7] sm:$0x1]
    %v164 = vlaneseq
    %v165 = vshrl.u32 %v164, 7
    %v166 = vsub.s32 0, %v165
    %v167 = vrot.slane %v162, %v166
    %169 = vmatprep.subr.mxu0 0.0
    %170 = vmatpush1.msra.mxu0 %v146
    %171 = vmatprep.subr.mxu0 0.0
    %172 = vmatpush1.msra.mxu0 %v147
    %173 = vmatprep.subr.mxu0 0.0
    %174 = vmatpush1.msra.mxu0 %v148
    %175 = vmatprep.subr.mxu0 0.0
    %176 = vmatpush1.msra.mxu0 %v149
    %177 = vmatprep.subr.mxu0 0.0
    %178 = vmatpush1.msra.mxu0 %v150
    %179 = vmatprep.subr.mxu0 0.0
    %180 = vmatpush1.msra.mxu0 %v151
    %181 = vmatprep.subr.mxu0 0.0
    %182 = vmatpush1.msra.mxu0 %v152
    %183 = vmatprep.subr.mxu0 0.0
    %184 = vmatpush1.msra.mxu0 %v153
    %185 = vmatprep.subr.mxu0 0.0
    %186 = vmatpush1.msra.mxu0 %v154
    %187 = vmatprep.subr.mxu0 0.0
    %188 = vmatpush1.msra.mxu0 %v155
    %189 = vmatprep.subr.mxu0 0.0
    %190 = vmatpush1.msra.mxu0 %v156
    %191 = vmatprep.subr.mxu0 0.0
    %192 = vmatpush1.msra.mxu0 %v157
    %193 = vmatprep.subr.mxu0 0.0
    %194 = vmatpush1.msra.mxu0 %v158
    %195 = vmatprep.subr.mxu0 0.0
    %196 = vmatpush1.msra.mxu0 %v159
    %197 = vmatprep.subr.mxu0 0.0
    %198 = vmatpush1.msra.mxu0 %v160
    %199 = vmatprep.subr.mxu0 0.0
    %200 = vmatpush1.msra.mxu0 %v161
    %201 = vmatprep.subr.mxu0 0.0
    %202 = vmatpush1.msra.mxu0 0.0
    %203 = vmatprep.subr.mxu0 0.0
    %204 = vmatpush1.msra.mxu0 0.0
    %205 = vmatprep.subr.mxu0 0.0
    %206 = vmatpush1.msra.mxu0 0.0
    %207 = vmatprep.subr.mxu0 0.0
    %208 = vmatpush1.msra.mxu0 0.0
    %209 = vmatprep.subr.mxu0 0.0
    %210 = vmatpush1.msra.mxu0 0.0
    %211 = vmatprep.subr.mxu0 0.0
    %212 = vmatpush1.msra.mxu0 0.0
    %213 = vmatprep.subr.mxu0 0.0
    %214 = vmatpush1.msra.mxu0 0.0
    %215 = vmatprep.subr.mxu0 0.0
    %216 = vmatpush1.msra.mxu0 0.0
    %217 = vmatprep.subr.mxu0 0.0
    %218 = vmatpush1.msra.mxu0 0.0
    %219 = vmatprep.subr.mxu0 0.0
    %220 = vmatpush1.msra.mxu0 0.0
    %221 = vmatprep.subr.mxu0 0.0
    %222 = vmatpush1.msra.mxu0 0.0
    %223 = vmatprep.subr.mxu0 0.0
    %224 = vmatpush1.msra.mxu0 0.0
    %225 = vmatprep.subr.mxu0 0.0
    %226 = vmatpush1.msra.mxu0 0.0
    %227 = vmatprep.subr.mxu0 0.0
    %228 = vmatpush1.msra.mxu0 0.0
    %229 = vmatprep.subr.mxu0 0.0
    %230 = vmatpush1.msra.mxu0 0.0
    %231 = vmatprep.subr.mxu0 0.0
    %232 = vmatpush1.msra.mxu0 0.0
    %233 = vmatprep.mubr.f32.mxu0 0.0
    %234 = vmatmul.mubr.f32.gmra.mrb[0].mxu0 %v145
    %v235 = vpop.f32.mrb[0].mxu0
    %v236 = vadd.f32 %v167, %v235
    %v237 = vpop.f32.mrb[0].mxu0
    %238 = vdwg.mxu0
    %v239 = vmax.f32 %v236, 0.0
    %v240 = vld [vmem:[#allocation8] sm:$0xff]
    %v241 = vld [vmem:[#allocation8 + $0x8] sm:$0xff]
    %v242 = vld [vmem:[#allocation8 + $0x10] sm:$0xff]
    %v243 = vld [vmem:[#allocation8 + $0x18] sm:$0xff]
    %v244 = vld [vmem:[#allocation8 + $0x20] sm:$0xff]
    %v245 = vld [vmem:[#allocation8 + $0x28] sm:$0xff]
    %v246 = vld [vmem:[#allocation8 + $0x30] sm:$0xff]
    %v247 = vld [vmem:[#allocation8 + $0x38] sm:$0xff]
    %v248 = vld [vmem:[#allocation8 + $0x40] sm:$0xff]
    %v249 = vld [vmem:[#allocation8 + $0x48] sm:$0xff]
    %v250 = vld [vmem:[#allocation8 + $0x50] sm:$0xff]
    %v251 = vld [vmem:[#allocation8 + $0x58] sm:$0xff]
    %v252 = vld [vmem:[#allocation8 + $0x60] sm:$0xff]
    %v253 = vld [vmem:[#allocation8 + $0x68] sm:$0xff]
    %v254 = vld [vmem:[#allocation8 + $0x70] sm:$0xff]
    %v255 = vld [vmem:[#allocation8 + $0x78] sm:$0xff]
    %v256 = vld [vmem:[#allocation10] sm:$0x1]
    %v258 = vlaneseq
    %v259 = vshrl.u32 %v258, 7
    %v260 = vsub.s32 0, %v259
    %v261 = vrot.slane %v256, %v260
    %263 = vmatprep.subr.mxu0 0.0
    %264 = vmatpush1.msra.mxu0 %v240
    %265 = vmatprep.subr.mxu0 0.0
    %266 = vmatpush1.msra.mxu0 %v241
    %267 = vmatprep.subr.mxu0 0.0
    %268 = vmatpush1.msra.mxu0 %v242
    %269 = vmatprep.subr.mxu0 0.0
    %270 = vmatpush1.msra.mxu0 %v243
    %271 = vmatprep.subr.mxu0 0.0
    %272 = vmatpush1.msra.mxu0 %v244
    %273 = vmatprep.subr.mxu0 0.0
    %274 = vmatpush1.msra.mxu0 %v245
    %275 = vmatprep.subr.mxu0 0.0
    %276 = vmatpush1.msra.mxu0 %v246
    %277 = vmatprep.subr.mxu0 0.0
    %278 = vmatpush1.msra.mxu0 %v247
    %279 = vmatprep.subr.mxu0 0.0
    %280 = vmatpush1.msra.mxu0 %v248
    %281 = vmatprep.subr.mxu0 0.0
    %282 = vmatpush1.msra.mxu0 %v249
    %283 = vmatprep.subr.mxu0 0.0
    %284 = vmatpush1.msra.mxu0 %v250
    %285 = vmatprep.subr.mxu0 0.0
    %286 = vmatpush1.msra.mxu0 %v251
    %287 = vmatprep.subr.mxu0 0.0
    %288 = vmatpush1.msra.mxu0 %v252
    %289 = vmatprep.subr.mxu0 0.0
    %290 = vmatpush1.msra.mxu0 %v253
    %291 = vmatprep.subr.mxu0 0.0
    %292 = vmatpush1.msra.mxu0 %v254
    %293 = vmatprep.subr.mxu0 0.0
    %294 = vmatpush1.msra.mxu0 %v255
    %295 = vmatprep.subr.mxu0 0.0
    %296 = vmatpush1.msra.mxu0 0.0
    %297 = vmatprep.subr.mxu0 0.0
    %298 = vmatpush1.msra.mxu0 0.0
    %299 = vmatprep.subr.mxu0 0.0
    %300 = vmatpush1.msra.mxu0 0.0
    %301 = vmatprep.subr.mxu0 0.0
    %302 = vmatpush1.msra.mxu0 0.0
    %303 = vmatprep.subr.mxu0 0.0
    %304 = vmatpush1.msra.mxu0 0.0
    %305 = vmatprep.subr.mxu0 0.0
    %306 = vmatpush1.msra.mxu0 0.0
    %307 = vmatprep.subr.mxu0 0.0
    %308 = vmatpush1.msra.mxu0 0.0
    %309 = vmatprep.subr.mxu0 0.0
    %310 = vmatpush1.msra.mxu0 0.0
    %311 = vmatprep.subr.mxu0 0.0
    %312 = vmatpush1.msra.mxu0 0.0
    %313 = vmatprep.subr.mxu0 0.0
    %314 = vmatpush1.msra.mxu0 0.0
    %315 = vmatprep.subr.mxu0 0.0
    %316 = vmatpush1.msra.mxu0 0.0
    %317 = vmatprep.subr.mxu0 0.0
    %318 = vmatpush1.msra.mxu0 0.0
    %319 = vmatprep.subr.mxu0 0.0
    %320 = vmatpush1.msra.mxu0 0.0
    %321 = vmatprep.subr.mxu0 0.0
    %322 = vmatpush1.msra.mxu0 0.0
    %323 = vmatprep.subr.mxu0 0.0
    %324 = vmatpush1.msra.mxu0 0.0
    %325 = vmatprep.subr.mxu0 0.0
    %326 = vmatpush1.msra.mxu0 0.0
    %327 = vmatprep.mubr.f32.mxu0 0.0
    %328 = vmatmul.mubr.f32.gmra.mrb[0].mxu0 %v239
    %v329 = vpop.f32.mrb[0].mxu0
    %v330 = vadd.f32 %v261, %v329
    %v331 = vpop.f32.mrb[0].mxu0
    %332 = vdwg.mxu0
    %v333 = vmax.f32 %v330, 0.0
    %v334 = vld [vmem:[#allocation11] sm:$0xff]
    %v335 = vld [vmem:[#allocation11 + $0x8] sm:$0xff]
    %v336 = vld [vmem:[#allocation11 + $0x10] sm:$0xff]
    %v337 = vld [vmem:[#allocation11 + $0x18] sm:$0xff]
    %v338 = vld [vmem:[#allocation11 + $0x20] sm:$0xff]
    %v339 = vld [vmem:[#allocation11 + $0x28] sm:$0xff]
    %v340 = vld [vmem:[#allocation11 + $0x30] sm:$0xff]
    %v341 = vld [vmem:[#allocation11 + $0x38] sm:$0xff]
    %v342 = vld [vmem:[#allocation11 + $0x40] sm:$0xff]
    %v343 = vld [vmem:[#allocation11 + $0x48] sm:$0xff]
    %v344 = vld [vmem:[#allocation11 + $0x50] sm:$0xff]
    %v345 = vld [vmem:[#allocation11 + $0x58] sm:$0xff]
    %v346 = vld [vmem:[#allocation11 + $0x60] sm:$0xff]
    %v347 = vld [vmem:[#allocation11 + $0x68] sm:$0xff]
    %v348 = vld [vmem:[#allocation11 + $0x70] sm:$0xff]
    %v349 = vld [vmem:[#allocation11 + $0x78] sm:$0xff]
    %v350 = vld [vmem:[#allocation13] sm:$0x1]
    %v352 = vlaneseq
    %v353 = vshrl.u32 %v352, 7
    %v354 = vsub.s32 0, %v353
    %v355 = vrot.slane %v350, %v354
    %357 = vmatprep.subr.mxu0 0.0
    %358 = vmatpush1.msra.mxu0 %v334
    %359 = vmatprep.subr.mxu0 0.0
    %360 = vmatpush1.msra.mxu0 %v335
    %361 = vmatprep.subr.mxu0 0.0
    %362 = vmatpush1.msra.mxu0 %v336
    %363 = vmatprep.subr.mxu0 0.0
    %364 = vmatpush1.msra.mxu0 %v337
    %365 = vmatprep.subr.mxu0 0.0
    %366 = vmatpush1.msra.mxu0 %v338
    %367 = vmatprep.subr.mxu0 0.0
    %368 = vmatpush1.msra.mxu0 %v339
    %369 = vmatprep.subr.mxu0 0.0
    %370 = vmatpush1.msra.mxu0 %v340
    %371 = vmatprep.subr.mxu0 0.0
    %372 = vmatpush1.msra.mxu0 %v341
    %373 = vmatprep.subr.mxu0 0.0
    %374 = vmatpush1.msra.mxu0 %v342
    %375 = vmatprep.subr.mxu0 0.0
    %376 = vmatpush1.msra.mxu0 %v343
    %377 = vmatprep.subr.mxu0 0.0
    %378 = vmatpush1.msra.mxu0 %v344
    %379 = vmatprep.subr.mxu0 0.0
    %380 = vmatpush1.msra.mxu0 %v345
    %381 = vmatprep.subr.mxu0 0.0
    %382 = vmatpush1.msra.mxu0 %v346
    %383 = vmatprep.subr.mxu0 0.0
    %384 = vmatpush1.msra.mxu0 %v347
    %385 = vmatprep.subr.mxu0 0.0
    %386 = vmatpush1.msra.mxu0 %v348
    %387 = vmatprep.subr.mxu0 0.0
    %388 = vmatpush1.msra.mxu0 %v349
    %389 = vmatprep.subr.mxu0 0.0
    %390 = vmatpush1.msra.mxu0 0.0
    %391 = vmatprep.subr.mxu0 0.0
    %392 = vmatpush1.msra.mxu0 0.0
    %393 = vmatprep.subr.mxu0 0.0
    %394 = vmatpush1.msra.mxu0 0.0
    %395 = vmatprep.subr.mxu0 0.0
    %396 = vmatpush1.msra.mxu0 0.0
    %397 = vmatprep.subr.mxu0 0.0
    %398 = vmatpush1.msra.mxu0 0.0
    %399 = vmatprep.subr.mxu0 0.0
    %400 = vmatpush1.msra.mxu0 0.0
    %401 = vmatprep.subr.mxu0 0.0
    %402 = vmatpush1.msra.mxu0 0.0
    %403 = vmatprep.subr.mxu0 0.0
    %404 = vmatpush1.msra.mxu0 0.0
    %405 = vmatprep.subr.mxu0 0.0
    %406 = vmatpush1.msra.mxu0 0.0
    %407 = vmatprep.subr.mxu0 0.0
    %408 = vmatpush1.msra.mxu0 0.0
    %409 = vmatprep.subr.mxu0 0.0
    %410 = vmatpush1.msra.mxu0 0.0
    %411 = vmatprep.subr.mxu0 0.0
    %412 = vmatpush1.msra.mxu0 0.0
    %413 = vmatprep.subr.mxu0 0.0
    %414 = vmatpush1.msra.mxu0 0.0
    %415 = vmatprep.subr.mxu0 0.0
    %416 = vmatpush1.msra.mxu0 0.0
    %417 = vmatprep.subr.mxu0 0.0
    %418 = vmatpush1.msra.mxu0 0.0
    %419 = vmatprep.subr.mxu0 0.0
    %420 = vmatpush1.msra.mxu0 0.0
    %421 = vmatprep.mubr.f32.mxu0 0.0
    %422 = vmatmul.mubr.f32.gmra.mrb[0].mxu0 %v333
    %v423 = vpop.f32.mrb[0].mxu0
    %v424 = vadd.f32 %v355, %v423
    %v425 = vpop.f32.mrb[0].mxu0
    %426 = vdwg.mxu0
    %v427 = vmax.f32 %v424, 0.0
    %v428 = vld [vmem:[#allocation14] sm:$0xff]
    %v429 = vld [vmem:[#allocation14 + $0x8] sm:$0xff]
    %v430 = vld [vmem:[#allocation14 + $0x10] sm:$0xff]
    %v431 = vld [vmem:[#allocation14 + $0x18] sm:$0xff]
    %v432 = vld [vmem:[#allocation14 + $0x20] sm:$0xff]
    %v433 = vld [vmem:[#allocation14 + $0x28] sm:$0xff]
    %v434 = vld [vmem:[#allocation14 + $0x30] sm:$0xff]
    %v435 = vld [vmem:[#allocation14 + $0x38] sm:$0xff]
    %v436 = vld [vmem:[#allocation14 + $0x40] sm:$0xff]
    %v437 = vld [vmem:[#allocation14 + $0x48] sm:$0xff]
    %v438 = vld [vmem:[#allocation14 + $0x50] sm:$0xff]
    %v439 = vld [vmem:[#allocation14 + $0x58] sm:$0xff]
    %v440 = vld [vmem:[#allocation14 + $0x60] sm:$0xff]
    %v441 = vld [vmem:[#allocation14 + $0x68] sm:$0xff]
    %v442 = vld [vmem:[#allocation14 + $0x70] sm:$0xff]
    %v443 = vld [vmem:[#allocation14 + $0x78] sm:$0xff]
    %v444 = vld [vmem:[#allocation16] sm:$0x1]
    %v446 = vlaneseq
    %v447 = vshrl.u32 %v446, 7
    %v448 = vsub.s32 0, %v447
    %v449 = vrot.slane %v444, %v448
    %451 = vmatprep.subr.mxu0 0.0
    %452 = vmatpush1.msra.mxu0 %v428
    %453 = vmatprep.subr.mxu0 0.0
    %454 = vmatpush1.msra.mxu0 %v429
    %455 = vmatprep.subr.mxu0 0.0
    %456 = vmatpush1.msra.mxu0 %v430
    %457 = vmatprep.subr.mxu0 0.0
    %458 = vmatpush1.msra.mxu0 %v431
    %459 = vmatprep.subr.mxu0 0.0
    %460 = vmatpush1.msra.mxu0 %v432
    %461 = vmatprep.subr.mxu0 0.0
    %462 = vmatpush1.msra.mxu0 %v433
    %463 = vmatprep.subr.mxu0 0.0
    %464 = vmatpush1.msra.mxu0 %v434
    %465 = vmatprep.subr.mxu0 0.0
    %466 = vmatpush1.msra.mxu0 %v435
    %467 = vmatprep.subr.mxu0 0.0
    %468 = vmatpush1.msra.mxu0 %v436
    %469 = vmatprep.subr.mxu0 0.0
    %470 = vmatpush1.msra.mxu0 %v437
    %471 = vmatprep.subr.mxu0 0.0
    %472 = vmatpush1.msra.mxu0 %v438
    %473 = vmatprep.subr.mxu0 0.0
    %474 = vmatpush1.msra.mxu0 %v439
    %475 = vmatprep.subr.mxu0 0.0
    %476 = vmatpush1.msra.mxu0 %v440
    %477 = vmatprep.subr.mxu0 0.0
    %478 = vmatpush1.msra.mxu0 %v441
    %479 = vmatprep.subr.mxu0 0.0
    %480 = vmatpush1.msra.mxu0 %v442
    %481 = vmatprep.subr.mxu0 0.0
    %482 = vmatpush1.msra.mxu0 %v443
    %483 = vmatprep.subr.mxu0 0.0
    %484 = vmatpush1.msra.mxu0 0.0
    %485 = vmatprep.subr.mxu0 0.0
    %486 = vmatpush1.msra.mxu0 0.0
    %487 = vmatprep.subr.mxu0 0.0
    %488 = vmatpush1.msra.mxu0 0.0
    %489 = vmatprep.subr.mxu0 0.0
    %490 = vmatpush1.msra.mxu0 0.0
    %491 = vmatprep.subr.mxu0 0.0
    %492 = vmatpush1.msra.mxu0 0.0
    %493 = vmatprep.subr.mxu0 0.0
    %494 = vmatpush1.msra.mxu0 0.0
    %495 = vmatprep.subr.mxu0 0.0
    %496 = vmatpush1.msra.mxu0 0.0
    %497 = vmatprep.subr.mxu0 0.0
    %498 = vmatpush1.msra.mxu0 0.0
    %499 = vmatprep.subr.mxu0 0.0
    %500 = vmatpush1.msra.mxu0 0.0
    %501 = vmatprep.subr.mxu0 0.0
    %502 = vmatpush1.msra.mxu0 0.0
    %503 = vmatprep.subr.mxu0 0.0
    %504 = vmatpush1.msra.mxu0 0.0
    %505 = vmatprep.subr.mxu0 0.0
    %506 = vmatpush1.msra.mxu0 0.0
    %507 = vmatprep.subr.mxu0 0.0
    %508 = vmatpush1.msra.mxu0 0.0
    %509 = vmatprep.subr.mxu0 0.0
    %510 = vmatpush1.msra.mxu0 0.0
    %511 = vmatprep.subr.mxu0 0.0
    %512 = vmatpush1.msra.mxu0 0.0
    %513 = vmatprep.subr.mxu0 0.0
    %514 = vmatpush1.msra.mxu0 0.0
    %515 = vmatprep.mubr.f32.mxu0 0.0
    %516 = vmatmul.mubr.f32.gmra.mrb[0].mxu0 %v427
    %v517 = vpop.f32.mrb[0].mxu0
    %v518 = vadd.f32 %v449, %v517
    %v519 = vpop.f32.mrb[0].mxu0
    %520 = vdwg.mxu0
    %521 = vst [vmem:[#allocation17] sm:$0xff] %v518
    // Predicated region
    $region74: #{mlp_time_forward.1} parent=1 // pred_check
      _
    $region75: #{mlp_time_forward.1} parent=1 // pred_check_branch
      %523 = sbr.rel (0) target = $region77
    $region76: #{mlp_time_forward.1} parent=1 // pred_region
      %s525 = ssub.s32 128, 128
      %526 = vsyncadd [#allocation4], %s525
      %s528 = sshll.u32 [#allocation17], 4
      %s529 = int_to_ptr.vmem [resolvable:$true] %s528
      %531 = dma.vmem_to_hbm [thread:$0]  %s529, 128, %s9, [#allocation4]
    $region77: #{mlp_time_forward.1} parent=1 // pred_fallthru
      _
    // Predicated region
    $region78: #{mlp_time_forward.1} parent=1 // pred_check
      _
    $region79: #{mlp_time_forward.1} parent=1 // pred_check_branch
      %533 = sbr.rel (0) target = $region81
    $region80: #{mlp_time_forward.1} parent=1 // pred_region
      %534 = dma.done [#allocation4], 128
    $region81: #{mlp_time_forward.1} parent=1 // pred_fallthru
      _
    %535 = vsyncpa [#allocation3], 1
    %536 = vsyncpa [#allocation6], 1
    %537 = vsyncpa [#allocation9], 1
    %538 = vsyncpa [#allocation12], 1
    %539 = vsyncpa [#allocation15], 1
    %540 = vsyncpa [#allocation4], 1

</llo_original>
